<compile_context>
chip_gen: v7x
topology: tpu7x:2x2x1
jax: 0.10.0
libtpu: 0.0.40
codegen_flags: <defaults>
</compile_context>

<pallas_src>
import jax
import jax.numpy as jnp
from jax.experimental import pallas as pl
from jax.experimental.pallas import tpu as pltpu


def mynet_kernel(x_ref, w1_ref, b1_ref, w2_ref, b2_ref, w3_ref, b3_ref, o_ref):
    # x_ref: (TM, IN) f32 ; w1: (IN, H) bf16 ; b1: (1, H) f32
    # w2: (H, H) bf16 ; b2: (1, H) f32 ; w3: (H, OUT) bf16 ; b3: (1, OUT) f32
    # o_ref: (TM, OUT) f32 (exact width; masked stores on the narrow OUT tile are cheap).
    x = x_ref[...].astype(jnp.bfloat16)   # in-kernel cast: rides the VPU slot, no XLA pass

    # bf16 matmul inputs, f32 MXU accumulation; bias add + ReLU in f32 (VPU path).
    h1 = jnp.dot(x, w1_ref[...], preferred_element_type=jnp.float32) + b1_ref[...]
    h1 = jnp.maximum(h1, 0.0)

    h2 = jnp.dot(h1.astype(jnp.bfloat16), w2_ref[...],
                 preferred_element_type=jnp.float32) + b2_ref[...]
    h2 = jnp.maximum(h2, 0.0)

    logits = jnp.dot(h2.astype(jnp.bfloat16), w3_ref[...],
                     preferred_element_type=jnp.float32) + b3_ref[...]
    o_ref[...] = logits.astype(o_ref.dtype)


def pack_params(params):
    """One-time prep: bf16 weights for the MXU, f32 row-vector biases.

    Run once at init / checkpoint load; the per-call path does no weight work.
    """
    w1, b1, w2, b2, w3, b3 = params
    return (
        w1.astype(jnp.bfloat16),
        b1.reshape(1, -1).astype(jnp.float32),
        w2.astype(jnp.bfloat16),
        b2.reshape(1, -1).astype(jnp.float32),
        w3.astype(jnp.bfloat16),
        b3.reshape(1, -1).astype(jnp.float32),
    )


def _round8(n):
    return ((n + 7) // 8) * 8


def mynet_forward(obs, packed_params, state=None, *, block_m=1024):
    """Pallas equivalent of MyNet.forward. Returns (logits, state).

    `packed_params` must come from pack_params() (pre-cast bf16 weights, f32 biases).
    """
    w1, b1, w2, b2, w3, b3 = packed_params
    batch = obs.shape[0]
    x = obs.astype(jnp.float32).reshape(batch, -1)     # obs.view(batch, -1)
    in_dim = x.shape[1]
    hidden = w1.shape[1]
    out_dim = w3.shape[1]

    # ---- batch tiling: 1-D grid over row tiles, weights pinned resident in VMEM ----
    tm = min(block_m, _round8(batch))                  # sublane-aligned row tile
    # v7x megacore: make sure the "parallel" axis has >=2 grid steps once the batch is
    # big enough that splitting it beats the per-step overhead (tiny batches keep grid=1).
    if batch >= 256 and pl.cdiv(batch, tm) < 2:
        tm = _round8(pl.cdiv(batch, 2))
    b_pad = pl.cdiv(batch, tm) * tm
    if b_pad != batch:
        x = jnp.pad(x, ((0, b_pad - batch), (0, 0)))
    grid = (b_pad // tm,)

    row_map = lambda i: (i, 0)                         # streamed per grid step
    pin_map = lambda i: (0, 0)                         # same block every step -> no re-DMA

    flops = 2 * b_pad * (in_dim * hidden + hidden * hidden + hidden * out_dim)
    bytes_accessed = (x.size * 4
                      + (w1.size + w2.size + w3.size) * 2
                      + (b1.size + b2.size + b3.size) * 4
                      + b_pad * out_dim * 4)

    logits_p = pl.pallas_call(
        mynet_kernel,
        out_shape=jax.ShapeDtypeStruct((b_pad, out_dim), jnp.float32),
        grid_spec=pltpu.PrefetchScalarGridSpec(
            num_scalar_prefetch=0,
            grid=grid,
            in_specs=[
                pl.BlockSpec((tm, in_dim), row_map),       # x tile (streamed, f32)
                pl.BlockSpec((in_dim, hidden), pin_map),   # w1 (resident bf16)
                pl.BlockSpec((1, hidden), pin_map),        # b1
                pl.BlockSpec((hidden, hidden), pin_map),   # w2
                pl.BlockSpec((1, hidden), pin_map),        # b2
                pl.BlockSpec((hidden, out_dim), pin_map),  # w3 (exact width, no pad)
                pl.BlockSpec((1, out_dim), pin_map),       # b3
            ],
            out_specs=pl.BlockSpec((tm, out_dim), row_map),
        ),
        compiler_params=pltpu.CompilerParams(
            dimension_semantics=("parallel",),   # batch tiles shard across v7x's 2 TCs
        ),
        cost_estimate=pl.CostEstimate(
            flops=flops, transcendentals=0, bytes_accessed=bytes_accessed),
    )(x, w1, b1, w2, b2, w3, b3)

    logits = logits_p[:batch] if b_pad != batch else logits_p
    return logits, state


def init_params(key, in_dim, hidden, out_dim):
    """Deterministic synthetic init (PyTorch-like uniform fan-in scaling)."""
    ks = jax.random.split(key, 6)

    def lin(kw, kb, fan_in, fan_out):
        bound = 1.0 / jnp.sqrt(fan_in)
        w = jax.random.uniform(kw, (fan_in, fan_out), jnp.float32, -bound, bound)
        b = jax.random.uniform(kb, (1, fan_out), jnp.float32, -bound, bound)
        return w, b

    w1, b1 = lin(ks[0], ks[1], in_dim, hidden)
    w2, b2 = lin(ks[2], ks[3], hidden, hidden)
    w3, b3 = lin(ks[4], ks[5], hidden, out_dim)
    return w1, b1, w2, b2, w3, b3


if __name__ == "__main__":
    key = jax.random.PRNGKey(0)
    k_obs, k_par = jax.random.split(key)

    # state_shape = (4, 4) -> IN = 16 ; action_shape = (8,) -> OUT = 8 ; batch = 32
    batch = 32
    state_shape = (4, 4)
    in_dim = 16
    out_dim = 8
    hidden = 128

    obs = jax.random.normal(k_obs, (batch,) + state_shape, dtype=jnp.float32)
    params = init_params(k_par, in_dim, hidden, out_dim)
    packed = pack_params(params)   # one-time weight prep (bf16 cast) outside the call path

    # Pure-JAX f32 reference (kernel uses bf16 matmul inputs -> relaxed tolerance).
    x = obs.reshape(batch, -1)
    w1, b1, w2, b2, w3, b3 = params
    ref = jnp.maximum(x @ w1 + b1, 0.0)
    ref = jnp.maximum(ref @ w2 + b2, 0.0)
    ref = ref @ w3 + b3

    # 1) Default tiling path (grid collapses to a single tile for this tiny batch).
    logits, state = mynet_forward(obs, packed, state=None)
    logits = jax.block_until_ready(logits)
    assert logits.shape == (batch, out_dim)
    assert state is None
    assert jnp.allclose(logits, ref, atol=3e-2, rtol=3e-2), \
        float(jnp.max(jnp.abs(logits - ref)))

    # 2) block_m=8 so even this small demo batch exercises a multi-step row grid (4 tiles).
    logits_tiled, _ = mynet_forward(obs, packed, state=None, block_m=8)
    logits_tiled = jax.block_until_ready(logits_tiled)
    assert jnp.allclose(logits_tiled, ref, atol=3e-2, rtol=3e-2), \
        float(jnp.max(jnp.abs(logits_tiled - ref)))

    print("KERNEL_OK")
</pallas_src>

<mosaic_0001>
module attributes {stable_mosaic.version = 11 : i64} {
  func.func @mynet_kernel(%arg0: i32, %arg1: memref<32x16xf32, #tpu.memory_space<vmem>>, %arg2: memref<16x128xbf16, #tpu.memory_space<vmem>>, %arg3: memref<1x128xf32, #tpu.memory_space<vmem>>, %arg4: memref<128x128xbf16, #tpu.memory_space<vmem>>, %arg5: memref<1x128xf32, #tpu.memory_space<vmem>>, %arg6: memref<128x8xbf16, #tpu.memory_space<vmem>>, %arg7: memref<1x8xf32, #tpu.memory_space<vmem>>, %arg8: memref<32x8xf32, #tpu.memory_space<vmem>>) attributes {dimension_semantics = [#tpu.dimension_semantics<parallel>], iteration_bounds = array<i64: 1>, scalar_prefetch = 0 : i64, scratch_operands = 0 : i64, tpu.core_type = #tpu.core_type<tc>, window_params = [{transform_indices = @transform_0, window_bounds = array<i64: 32, 16>}, {pipeline_mode = #tpu.pipeline_mode<synchronous>, transform_indices = @transform_1, window_bounds = array<i64: 16, 128>}, {pipeline_mode = #tpu.pipeline_mode<synchronous>, transform_indices = @transform_2, window_bounds = array<i64: 1, 128>}, {pipeline_mode = #tpu.pipeline_mode<synchronous>, transform_indices = @transform_3, window_bounds = array<i64: 128, 128>}, {pipeline_mode = #tpu.pipeline_mode<synchronous>, transform_indices = @transform_4, window_bounds = array<i64: 1, 128>}, {pipeline_mode = #tpu.pipeline_mode<synchronous>, transform_indices = @transform_5, window_bounds = array<i64: 128, 8>}, {pipeline_mode = #tpu.pipeline_mode<synchronous>, transform_indices = @transform_6, window_bounds = array<i64: 1, 8>}, {transform_indices = @transform_7, window_bounds = array<i64: 32, 8>}]} {
    %c0 = arith.constant 0 : index
    %c0_0 = arith.constant 0 : index
    %0 = vector.load %arg1[%c0, %c0_0] : memref<32x16xf32, #tpu.memory_space<vmem>>, vector<32x16xf32>
    %1 = arith.truncf %0 : vector<32x16xf32> to vector<32x16xbf16>
    %c0_1 = arith.constant 0 : index
    %c0_2 = arith.constant 0 : index
    %2 = vector.load %arg2[%c0_1, %c0_2] : memref<16x128xbf16, #tpu.memory_space<vmem>>, vector<16x128xbf16>
    %cst = arith.constant dense<0.000000e+00> : vector<32x128xf32>
    %3 = tpu.matmul %1, %2, %cst {dimension_numbers = #tpu.dot_dimension_numbers<[1], [0], [0], [1], [0, 0, 1, 1], [], []>} : vector<32x16xbf16>, vector<16x128xbf16>, vector<32x128xf32> -> vector<32x128xf32>
    %c0_3 = arith.constant 0 : index
    %c0_4 = arith.constant 0 : index
    %4 = vector.load %arg3[%c0_3, %c0_4] : memref<1x128xf32, #tpu.memory_space<vmem>>, vector<1x128xf32>
    %5 = vector.broadcast %4 : vector<1x128xf32> to vector<32x128xf32>
    %6 = arith.addf %3, %5 : vector<32x128xf32>
    %cst_5 = arith.constant 0.000000e+00 : f32
    %7 = vector.broadcast %cst_5 : f32 to vector<32x128xf32>
    %8 = arith.maximumf %6, %7 : vector<32x128xf32>
    %9 = arith.truncf %8 : vector<32x128xf32> to vector<32x128xbf16>
    %c0_6 = arith.constant 0 : index
    %c0_7 = arith.constant 0 : index
    %10 = vector.load %arg4[%c0_6, %c0_7] : memref<128x128xbf16, #tpu.memory_space<vmem>>, vector<128x128xbf16>
    %cst_8 = arith.constant dense<0.000000e+00> : vector<32x128xf32>
    %11 = tpu.matmul %9, %10, %cst_8 {dimension_numbers = #tpu.dot_dimension_numbers<[1], [0], [0], [1], [0, 0, 1, 1], [], []>} : vector<32x128xbf16>, vector<128x128xbf16>, vector<32x128xf32> -> vector<32x128xf32>
    %c0_9 = arith.constant 0 : index
    %c0_10 = arith.constant 0 : index
    %12 = vector.load %arg5[%c0_9, %c0_10] : memref<1x128xf32, #tpu.memory_space<vmem>>, vector<1x128xf32>
    %13 = vector.broadcast %12 : vector<1x128xf32> to vector<32x128xf32>
    %14 = arith.addf %11, %13 : vector<32x128xf32>
    %cst_11 = arith.constant 0.000000e+00 : f32
    %15 = vector.broadcast %cst_11 : f32 to vector<32x128xf32>
    %16 = arith.maximumf %14, %15 : vector<32x128xf32>
    %17 = arith.truncf %16 : vector<32x128xf32> to vector<32x128xbf16>
    %c0_12 = arith.constant 0 : index
    %c0_13 = arith.constant 0 : index
    %18 = vector.load %arg6[%c0_12, %c0_13] : memref<128x8xbf16, #tpu.memory_space<vmem>>, vector<128x8xbf16>
    %cst_14 = arith.constant dense<0.000000e+00> : vector<32x8xf32>
    %19 = tpu.matmul %17, %18, %cst_14 {dimension_numbers = #tpu.dot_dimension_numbers<[1], [0], [0], [1], [0, 0, 1, 1], [], []>} : vector<32x128xbf16>, vector<128x8xbf16>, vector<32x8xf32> -> vector<32x8xf32>
    %c0_15 = arith.constant 0 : index
    %c0_16 = arith.constant 0 : index
    %20 = vector.load %arg7[%c0_15, %c0_16] : memref<1x8xf32, #tpu.memory_space<vmem>>, vector<1x8xf32>
    %21 = vector.broadcast %20 : vector<1x8xf32> to vector<32x8xf32>
    %22 = arith.addf %19, %21 : vector<32x8xf32>
    %c0_17 = arith.constant 0 : index
    %c0_18 = arith.constant 0 : index
    %23 = vector.load %arg8[%c0_17, %c0_18] : memref<32x8xf32, #tpu.memory_space<vmem>>, vector<32x8xf32>
    tpu.vector_store %arg8[%c0_17, %c0_18], %22 {strides = array<i32>} : memref<32x8xf32, #tpu.memory_space<vmem>>, vector<32x8xf32>,
    return
  }
  func.func @transform_0(%arg0: i32) -> (i32, i32) {
    %c0_i32 = arith.constant 0 : i32
    %c0_i32_0 = arith.constant 0 : i32
    return %arg0, %c0_i32 : i32, i32
  }
  func.func @transform_1(%arg0: i32) -> (i32, i32) {
    %c0_i32 = arith.constant 0 : i32
    %c0_i32_0 = arith.constant 0 : i32
    %c0_i32_1 = arith.constant 0 : i32
    return %c0_i32, %c0_i32_0 : i32, i32
  }
  func.func @transform_2(%arg0: i32) -> (i32, i32) {
    %c0_i32 = arith.constant 0 : i32
    %c0_i32_0 = arith.constant 0 : i32
    %c0_i32_1 = arith.constant 0 : i32
    return %c0_i32, %c0_i32_0 : i32, i32
  }
  func.func @transform_3(%arg0: i32) -> (i32, i32) {
    %c0_i32 = arith.constant 0 : i32
    %c0_i32_0 = arith.constant 0 : i32
    %c0_i32_1 = arith.constant 0 : i32
    return %c0_i32, %c0_i32_0 : i32, i32
  }
  func.func @transform_4(%arg0: i32) -> (i32, i32) {
    %c0_i32 = arith.constant 0 : i32
    %c0_i32_0 = arith.constant 0 : i32
    %c0_i32_1 = arith.constant 0 : i32
    return %c0_i32, %c0_i32_0 : i32, i32
  }
  func.func @transform_5(%arg0: i32) -> (i32, i32) {
    %c0_i32 = arith.constant 0 : i32
    %c0_i32_0 = arith.constant 0 : i32
    %c0_i32_1 = arith.constant 0 : i32
    return %c0_i32, %c0_i32_0 : i32, i32
  }
  func.func @transform_6(%arg0: i32) -> (i32, i32) {
    %c0_i32 = arith.constant 0 : i32
    %c0_i32_0 = arith.constant 0 : i32
    %c0_i32_1 = arith.constant 0 : i32
    return %c0_i32, %c0_i32_0 : i32, i32
  }
  func.func @transform_7(%arg0: i32) -> (i32, i32) {
    %c0_i32 = arith.constant 0 : i32
    %c0_i32_0 = arith.constant 0 : i32
    return %arg0, %c0_i32 : i32, i32
  }
}

</mosaic_0001>

<llo_original>
// kernel: tpu_custom_call.1
$region0: #{tpu_custom_call.1}
  #allocation0 [shape = 'u32[]', space=smem, size = 0x4, offset = 0x4, fixed_abs, tag = 'smem constant byte address 0x4 - core index']
  #allocation1 [shape = 'u32[144,128]{1,0:T(1,128)}', space=vmem, size = 0x12000, scoped, tag = 'internal scratch']
  %s0 = inlined_call_operand.vmem [shape: f32[32,16], index: 0, kind: input, shape index: {}]
  %s1 = inlined_call_operand.vmem [shape: bf16[16,128], index: 1, kind: input, shape index: {}]
  %s2 = inlined_call_operand.vmem [shape: f32[1,128], index: 2, kind: input, shape index: {}]
  %s3 = inlined_call_operand.vmem [shape: bf16[128,128], index: 3, kind: input, shape index: {}]
  %s4 = inlined_call_operand.vmem [shape: f32[1,128], index: 4, kind: input, shape index: {}]
  %s5 = inlined_call_operand.vmem [shape: bf16[128,8], index: 5, kind: input, shape index: {}]
  %s6 = inlined_call_operand.vmem [shape: f32[1,8], index: 6, kind: input, shape index: {}]
  %s7 = inlined_call_operand.vmem [shape: f32[32,8], index: 7, kind: output, shape index: {}]
  %s8 = sld [smem:[#allocation0]]
  $region38: #{tpu_custom_call.1} parent=0
    _
  %s10 = ssub.s32 1, %s8
  %s11 = scalar_select 0, %s10, %s8
  // Predicated region
  $region2: #{tpu_custom_call.1} parent=0 // pred_check
    _
  $region3: #{tpu_custom_call.1} parent=0 // pred_check_branch
    %13 = sbr.rel (0) target = $region5
  $region4: #{tpu_custom_call.1} parent=0 // pred_region
    _
  $region5: #{tpu_custom_call.1} parent=0 // pred_fallthru
    _
  // Predicated region
  $region6: #{tpu_custom_call.1} parent=0 // pred_check
    _
  $region7: #{tpu_custom_call.1} parent=0 // pred_check_branch
    %15 = sbr.rel (0) target = $region9
  $region8: #{tpu_custom_call.1} parent=0 // pred_region
    _
  $region9: #{tpu_custom_call.1} parent=0 // pred_fallthru
    _
  // Predicated region
  $region10: #{tpu_custom_call.1} parent=0 // pred_check
    _
  $region11: #{tpu_custom_call.1} parent=0 // pred_check_branch
    %17 = sbr.rel (0) target = $region13
  $region12: #{tpu_custom_call.1} parent=0 // pred_region
    _
  $region13: #{tpu_custom_call.1} parent=0 // pred_fallthru
    _
  // Predicated region
  $region14: #{tpu_custom_call.1} parent=0 // pred_check
    _
  $region15: #{tpu_custom_call.1} parent=0 // pred_check_branch
    %19 = sbr.rel (0) target = $region17
  $region16: #{tpu_custom_call.1} parent=0 // pred_region
    _
  $region17: #{tpu_custom_call.1} parent=0 // pred_fallthru
    _
  // Predicated region
  $region18: #{tpu_custom_call.1} parent=0 // pred_check
    _
  $region19: #{tpu_custom_call.1} parent=0 // pred_check_branch
    %21 = sbr.rel (0) target = $region21
  $region20: #{tpu_custom_call.1} parent=0 // pred_region
    _
  $region21: #{tpu_custom_call.1} parent=0 // pred_fallthru
    _
  // Predicated region
  $region22: #{tpu_custom_call.1} parent=0 // pred_check
    _
  $region23: #{tpu_custom_call.1} parent=0 // pred_check_branch
    %23 = sbr.rel (0) target = $region25
  $region24: #{tpu_custom_call.1} parent=0 // pred_region
    _
  $region25: #{tpu_custom_call.1} parent=0 // pred_fallthru
    _
  // Predicated region
  $region26: #{tpu_custom_call.1} parent=0 // pred_check
    _
  $region27: #{tpu_custom_call.1} parent=0 // pred_check_branch
    %25 = sbr.rel (0) target = $region29
  $region28: #{tpu_custom_call.1} parent=0 // pred_region
    _
  $region29: #{tpu_custom_call.1} parent=0 // pred_fallthru
    _
  %v27 = vld [vmem:[%s0] sm:$0xff]
  %v28 = vld [vmem:[%s0 + $0x8] sm:$0xff]
  %v29 = vld [vmem:[%s0 + $0x10] sm:$0xff]
  %v30 = vld [vmem:[%s0 + $0x18] sm:$0xff]
  %v31 = vpack.c.bf16 %v28, %v27
  %v32 = vpack.c.bf16 %v30, %v29
  %v33 = vld [vmem:[%s1] sm:$0xf]
  %v34 = vld [vmem:[%s1 + $0x4] sm:$0xf]
  %v35 = vld [vmem:[%s2] sm:$0x1]
  %v37 = vlaneseq
  %v38 = vshrl.u32 %v37, 7
  %v39 = vsub.s32 0, %v38
  %v40 = vrot.slane %v35, %v39
  %v44 = vunpack.c.l.b16 %v33
  %v45 = vunpack.c.l.b16 %v34
  %v46 = vpack.c.b16 %v45, %v44
  %vm48 = vcmask 130048
  %v50 = vsel %vm48, %v31, 0
  %v53 = vsel %vm48, %v32, 0
  %55 = vmatprep.subr.bf16.mxu0 0
  %56 = vmatpush1.bf16.msra.mxu0 %v46
  %57 = vmatprep.subr.bf16.mxu0 0
  %58 = vmatpush1.bf16.msra.mxu0 0
  %59 = vmatprep.subr.bf16.mxu0 0
  %60 = vmatpush1.bf16.msra.mxu0 0
  %61 = vmatprep.subr.bf16.mxu0 0
  %62 = vmatpush1.bf16.msra.mxu0 0
  %63 = vmatprep.subr.bf16.mxu0 0
  %64 = vmatpush1.bf16.msra.mxu0 0
  %65 = vmatprep.subr.bf16.mxu0 0
  %66 = vmatpush1.bf16.msra.mxu0 0
  %67 = vmatprep.subr.bf16.mxu0 0
  %68 = vmatpush1.bf16.msra.mxu0 0
  %69 = vmatprep.subr.bf16.mxu0 0
  %70 = vmatpush1.bf16.msra.mxu0 0
  %71 = vmatprep.subr.bf16.mxu0 0
  %72 = vmatpush1.bf16.msra.mxu0 0
  %73 = vmatprep.subr.bf16.mxu0 0
  %74 = vmatpush1.bf16.msra.mxu0 0
  %75 = vmatprep.subr.bf16.mxu0 0
  %76 = vmatpush1.bf16.msra.mxu0 0
  %77 = vmatprep.subr.bf16.mxu0 0
  %78 = vmatpush1.bf16.msra.mxu0 0
  %79 = vmatprep.subr.bf16.mxu0 0
  %80 = vmatpush1.bf16.msra.mxu0 0
  %81 = vmatprep.subr.bf16.mxu0 0
  %82 = vmatpush1.bf16.msra.mxu0 0
  %83 = vmatprep.subr.bf16.mxu0 0
  %84 = vmatpush1.bf16.msra.mxu0 0
  %85 = vmatprep.subr.bf16.mxu0 0
  %86 = vmatpush1.bf16.msra.mxu0 0
  %87 = vmatprep.mubr.bf16.mxu0 0
  %88 = vmatmul.mubr.bf16.gmra.mrb[0].mxu0 %v50
  %v89 = vpop.f32.mrb[0].mxu0
  %v90 = vadd.f32 %v40, %v89
  %v91 = vpop.f32.mrb[0].mxu0
  %v92 = vpop.f32.mrb[0].mxu0
  %v93 = vadd.f32 %v40, %v92
  %v94 = vpop.f32.mrb[0].mxu0
  %95 = vmatprep.mubr.bf16.mxu0 0
  %96 = vmatmul.mubr.bf16.gmra.mrb[0].mxu0 %v53
  %v97 = vpop.f32.mrb[0].mxu0
  %v98 = vadd.f32 %v40, %v97
  %v99 = vpop.f32.mrb[0].mxu0
  %v100 = vpop.f32.mrb[0].mxu0
  %v101 = vadd.f32 %v40, %v100
  %v102 = vpop.f32.mrb[0].mxu0
  %103 = vdwg.mxu0
  %v104 = vmax.f32 %v90, 0.0
  %v105 = vmax.f32 %v93, 0.0
  %v106 = vmax.f32 %v98, 0.0
  %v107 = vmax.f32 %v101, 0.0
  %v108 = vpack.c.bf16 %v105, %v104
  %v109 = vpack.c.bf16 %v107, %v106
  %v110 = vld [vmem:[%s3] sm:$0xf]
  %v111 = vld [vmem:[%s3 + $0x4] sm:$0xf]
  %v112 = vld [vmem:[%s3 + $0x8] sm:$0xf]
  %v113 = vld [vmem:[%s3 + $0xc] sm:$0xf]
  %v114 = vld [vmem:[%s3 + $0x10] sm:$0xf]
  %v115 = vld [vmem:[%s3 + $0x14] sm:$0xf]
  %v116 = vld [vmem:[%s3 + $0x18] sm:$0xf]
  %v117 = vld [vmem:[%s3 + $0x1c] sm:$0xf]
  %v118 = vld [vmem:[%s3 + $0x20] sm:$0xf]
  %v119 = vld [vmem:[%s3 + $0x24] sm:$0xf]
  %v120 = vld [vmem:[%s3 + $0x28] sm:$0xf]
  %v121 = vld [vmem:[%s3 + $0x2c] sm:$0xf]
  %v122 = vld [vmem:[%s3 + $0x30] sm:$0xf]
  %v123 = vld [vmem:[%s3 + $0x34] sm:$0xf]
  %v124 = vld [vmem:[%s3 + $0x38] sm:$0xf]
  %v125 = vld [vmem:[%s3 + $0x3c] sm:$0xf]
  %v126 = vld [vmem:[%s4] sm:$0x1]
  %v128 = vlaneseq
  %v129 = vshrl.u32 %v128, 7
  %v130 = vsub.s32 0, %v129
  %v131 = vrot.slane %v126, %v130
  %v149 = vunpack.c.l.b16 %v110
  %v150 = vunpack.c.l.b16 %v111
  %v151 = vunpack.c.l.b16 %v112
  %v152 = vunpack.c.l.b16 %v113
  %v153 = vunpack.c.l.b16 %v114
  %v154 = vunpack.c.l.b16 %v115
  %v155 = vunpack.c.l.b16 %v116
  %v156 = vunpack.c.l.b16 %v117
  %v157 = vunpack.c.l.b16 %v118
  %v158 = vunpack.c.l.b16 %v119
  %v159 = vunpack.c.l.b16 %v120
  %v160 = vunpack.c.l.b16 %v121
  %v161 = vunpack.c.l.b16 %v122
  %v162 = vunpack.c.l.b16 %v123
  %v163 = vunpack.c.l.b16 %v124
  %v164 = vunpack.c.l.b16 %v125
  %v165 = vpack.c.b16 %v150, %v149
  %v166 = vpack.c.b16 %v152, %v151
  %v167 = vpack.c.b16 %v154, %v153
  %v168 = vpack.c.b16 %v156, %v155
  %v169 = vpack.c.b16 %v158, %v157
  %v170 = vpack.c.b16 %v160, %v159
  %v171 = vpack.c.b16 %v162, %v161
  %v172 = vpack.c.b16 %v164, %v163
  %181 = vmatprep.subr.bf16.mxu0 0
  %182 = vmatpush1.bf16.msra.mxu0 %v165
  %183 = vmatprep.subr.bf16.mxu0 0
  %184 = vmatpush1.bf16.msra.mxu0 %v166
  %185 = vmatprep.subr.bf16.mxu0 0
  %186 = vmatpush1.bf16.msra.mxu0 %v167
  %187 = vmatprep.subr.bf16.mxu0 0
  %188 = vmatpush1.bf16.msra.mxu0 %v168
  %189 = vmatprep.subr.bf16.mxu0 0
  %190 = vmatpush1.bf16.msra.mxu0 %v169
  %191 = vmatprep.subr.bf16.mxu0 0
  %192 = vmatpush1.bf16.msra.mxu0 %v170
  %193 = vmatprep.subr.bf16.mxu0 0
  %194 = vmatpush1.bf16.msra.mxu0 %v171
  %195 = vmatprep.subr.bf16.mxu0 0
  %196 = vmatpush1.bf16.msra.mxu0 %v172
  %197 = vmatprep.subr.bf16.mxu0 0
  %198 = vmatpush1.bf16.msra.mxu0 0
  %199 = vmatprep.subr.bf16.mxu0 0
  %200 = vmatpush1.bf16.msra.mxu0 0
  %201 = vmatprep.subr.bf16.mxu0 0
  %202 = vmatpush1.bf16.msra.mxu0 0
  %203 = vmatprep.subr.bf16.mxu0 0
  %204 = vmatpush1.bf16.msra.mxu0 0
  %205 = vmatprep.subr.bf16.mxu0 0
  %206 = vmatpush1.bf16.msra.mxu0 0
  %207 = vmatprep.subr.bf16.mxu0 0
  %208 = vmatpush1.bf16.msra.mxu0 0
  %209 = vmatprep.subr.bf16.mxu0 0
  %210 = vmatpush1.bf16.msra.mxu0 0
  %211 = vmatprep.subr.bf16.mxu0 0
  %212 = vmatpush1.bf16.msra.mxu0 0
  %213 = vmatprep.mubr.bf16.mxu0 0
  %214 = vmatmul.mubr.bf16.gmra.mrb[0].mxu0 %v108
  %v215 = vpop.f32.mrb[0].mxu0
  %v216 = vadd.f32 %v131, %v215
  %v217 = vpop.f32.mrb[0].mxu0
  %v218 = vpop.f32.mrb[0].mxu0
  %v219 = vadd.f32 %v131, %v218
  %v220 = vpop.f32.mrb[0].mxu0
  %221 = vmatprep.mubr.bf16.mxu0 0
  %222 = vmatmul.mubr.bf16.gmra.mrb[0].mxu0 %v109
  %v223 = vpop.f32.mrb[0].mxu0
  %v224 = vadd.f32 %v131, %v223
  %v225 = vpop.f32.mrb[0].mxu0
  %v226 = vpop.f32.mrb[0].mxu0
  %v227 = vadd.f32 %v131, %v226
  %v228 = vpop.f32.mrb[0].mxu0
  %229 = vdwg.mxu0
  %v230 = vmax.f32 %v216, 0.0
  %v231 = vmax.f32 %v219, 0.0
  %v232 = vmax.f32 %v224, 0.0
  %v233 = vmax.f32 %v227, 0.0
  %v234 = vpack.c.bf16 %v231, %v230
  %v235 = vpack.c.bf16 %v233, %v232
  %v236 = vld [vmem:[%s5] sm:$0xf]
  %v237 = vld [vmem:[%s5 + $0x4] sm:$0xf]
  %v238 = vld [vmem:[%s5 + $0x8] sm:$0xf]
  %v239 = vld [vmem:[%s5 + $0xc] sm:$0xf]
  %v240 = vld [vmem:[%s5 + $0x10] sm:$0xf]
  %v241 = vld [vmem:[%s5 + $0x14] sm:$0xf]
  %v242 = vld [vmem:[%s5 + $0x18] sm:$0xf]
  %v243 = vld [vmem:[%s5 + $0x1c] sm:$0xf]
  %v244 = vld [vmem:[%s5 + $0x20] sm:$0xf]
  %v245 = vld [vmem:[%s5 + $0x24] sm:$0xf]
  %v246 = vld [vmem:[%s5 + $0x28] sm:$0xf]
  %v247 = vld [vmem:[%s5 + $0x2c] sm:$0xf]
  %v248 = vld [vmem:[%s5 + $0x30] sm:$0xf]
  %v249 = vld [vmem:[%s5 + $0x34] sm:$0xf]
  %v250 = vld [vmem:[%s5 + $0x38] sm:$0xf]
  %v251 = vld [vmem:[%s5 + $0x3c] sm:$0xf]
  %v252 = vld [vmem:[%s6] sm:$0x1]
  %v254 = vlaneseq
  %v255 = vshrl.u32 %v254, 7
  %v256 = vsub.s32 0, %v255
  %v257 = vrot.slane %v252, %v256
  %v275 = vunpack.c.l.b16 %v236
  %v276 = vunpack.c.l.b16 %v237
  %v277 = vunpack.c.l.b16 %v238
  %v278 = vunpack.c.l.b16 %v239
  %v279 = vunpack.c.l.b16 %v240
  %v280 = vunpack.c.l.b16 %v241
  %v281 = vunpack.c.l.b16 %v242
  %v282 = vunpack.c.l.b16 %v243
  %v283 = vunpack.c.l.b16 %v244
  %v284 = vunpack.c.l.b16 %v245
  %v285 = vunpack.c.l.b16 %v246
  %v286 = vunpack.c.l.b16 %v247
  %v287 = vunpack.c.l.b16 %v248
  %v288 = vunpack.c.l.b16 %v249
  %v289 = vunpack.c.l.b16 %v250
  %v290 = vunpack.c.l.b16 %v251
  %v291 = vpack.c.b16 %v276, %v275
  %v292 = vpack.c.b16 %v278, %v277
  %v293 = vpack.c.b16 %v280, %v279
  %v294 = vpack.c.b16 %v282, %v281
  %v295 = vpack.c.b16 %v284, %v283
  %v296 = vpack.c.b16 %v286, %v285
  %v297 = vpack.c.b16 %v288, %v287
  %v298 = vpack.c.b16 %v290, %v289
  %307 = vmatprep.subr.bf16.mxu0 0
  %308 = vmatpush1.bf16.msra.mxu0 %v291
  %309 = vmatprep.subr.bf16.mxu0 0
  %310 = vmatpush1.bf16.msra.mxu0 %v292
  %311 = vmatprep.subr.bf16.mxu0 0
  %312 = vmatpush1.bf16.msra.mxu0 %v293
  %313 = vmatprep.subr.bf16.mxu0 0
  %314 = vmatpush1.bf16.msra.mxu0 %v294
  %315 = vmatprep.subr.bf16.mxu0 0
  %316 = vmatpush1.bf16.msra.mxu0 %v295
  %317 = vmatprep.subr.bf16.mxu0 0
  %318 = vmatpush1.bf16.msra.mxu0 %v296
  %319 = vmatprep.subr.bf16.mxu0 0
  %320 = vmatpush1.bf16.msra.mxu0 %v297
  %321 = vmatprep.subr.bf16.mxu0 0
  %322 = vmatpush1.bf16.msra.mxu0 %v298
  %323 = vmatprep.subr.bf16.mxu0 0
  %324 = vmatpush1.bf16.msra.mxu0 0
  %325 = vmatprep.subr.bf16.mxu0 0
  %326 = vmatpush1.bf16.msra.mxu0 0
  %327 = vmatprep.subr.bf16.mxu0 0
  %328 = vmatpush1.bf16.msra.mxu0 0
  %329 = vmatprep.subr.bf16.mxu0 0
  %330 = vmatpush1.bf16.msra.mxu0 0
  %331 = vmatprep.subr.bf16.mxu0 0
  %332 = vmatpush1.bf16.msra.mxu0 0
  %333 = vmatprep.subr.bf16.mxu0 0
  %334 = vmatpush1.bf16.msra.mxu0 0
  %335 = vmatprep.subr.bf16.mxu0 0
  %336 = vmatpush1.bf16.msra.mxu0 0
  %337 = vmatprep.subr.bf16.mxu0 0
  %338 = vmatpush1.bf16.msra.mxu0 0
  %339 = vmatprep.mubr.bf16.mxu0 0
  %340 = vmatmul.mubr.bf16.gmra.mrb[0].mxu0 %v234
  %v341 = vpop.f32.mrb[0].mxu0
  %v342 = vadd.f32 %v257, %v341
  %v343 = vpop.f32.mrb[0].mxu0
  %v344 = vpop.f32.mrb[0].mxu0
  %v345 = vadd.f32 %v257, %v344
  %v346 = vpop.f32.mrb[0].mxu0
  %347 = vmatprep.mubr.bf16.mxu0 0
  %348 = vmatmul.mubr.bf16.gmra.mrb[0].mxu0 %v235
  %v349 = vpop.f32.mrb[0].mxu0
  %v350 = vadd.f32 %v257, %v349
  %v351 = vpop.f32.mrb[0].mxu0
  %v352 = vpop.f32.mrb[0].mxu0
  %v353 = vadd.f32 %v257, %v352
  %v354 = vpop.f32.mrb[0].mxu0
  %355 = vdwg.mxu0
  %vm356 = vcmask 64512
  %357 = vst.msk [vmem:[%s7] sm:$0xff] %vm356, %v342
  %358 = vst.msk [vmem:[%s7 + $0x8] sm:$0xff] %vm356, %v345
  %359 = vst.msk [vmem:[%s7 + $0x10] sm:$0xff] %vm356, %v350
  %360 = vst.msk [vmem:[%s7 + $0x18] sm:$0xff] %vm356, %v353
  // Predicated region
  $region30: #{tpu_custom_call.1} parent=0 // pred_check
    _
  $region31: #{tpu_custom_call.1} parent=0 // pred_check_branch
    %362 = sbr.rel (0) target = $region33
  $region32: #{tpu_custom_call.1} parent=0 // pred_region
    _
  $region33: #{tpu_custom_call.1} parent=0 // pred_fallthru
    _
  // Predicated region
  $region34: #{tpu_custom_call.1} parent=0 // pred_check
    _
  $region35: #{tpu_custom_call.1} parent=0 // pred_check_branch
    %364 = sbr.rel (0) target = $region37
  $region36: #{tpu_custom_call.1} parent=0 // pred_region
    _
  $region37: #{tpu_custom_call.1} parent=0 // pred_fallthru
    _

</llo_original>
